<compile_context>
chip_gen: v6e
topology: v6e:2x2x1
jax: 0.10.0
libtpu: 0.0.40
codegen_flags: <defaults>
</compile_context>

<pallas_src>
import jax
import jax.numpy as jnp
from jax.experimental import pallas as pl
from jax.experimental.pallas import tpu as pltpu


_SUB_ROWS = 256                          # in-kernel sub-chunk for F/G pipelining
_VMEM_BUDGET_BYTES = 40 * 1024 * 1024    # fits v7x's 64 MiB/TC with headroom
_VMEM_LIMIT_CAP = 56 * 1024 * 1024


def rev_block_kernel(x_ref, wf_ref, bf_ref, wg_ref, bg_ref, out_ref):
    """One (TM, 2H) row tile of the reversible block.

    x_ref:   (TM, 2H) activations; left lane half = x1, right lane half = x2.
    wf/wg:   (H, H)  weights, resident across the whole grid.
    bf/bg:   (1, H)  biases,  resident across the whole grid.
    out_ref: (TM, 2H) output written half-by-half as [y1 | y2].
    """
    H = wf_ref.shape[0]
    TM = x_ref.shape[0]
    sub = _SUB_ROWS if (TM > _SUB_ROWS and TM % _SUB_ROWS == 0) else TM
    n_sub = TM // sub

    wf = wf_ref[...]
    wg = wg_ref[...]
    bf = bf_ref[...]
    bg = bg_ref[...]

    def f_of(j):
        # F(x2) for sub-chunk j: MXU matmul, f32 accumulation; bias add on VPU.
        x2 = x_ref[j * sub:(j + 1) * sub, H:]
        return jnp.dot(x2, wf, preferred_element_type=jnp.float32) + bf

    # One-deep software pipeline over sub-chunks (statically unrolled; n_sub is
    # small). F(j+1) is issued before G(j), so the two independent matmuls can
    # overlap on the MXU instead of serializing across the dot1 -> dot2 chain.
    f_next = f_of(0)
    for j in range(n_sub):
        rows = slice(j * sub, (j + 1) * sub)
        f_cur = f_next

        # y1 = x1 + F(x2); stored immediately -> short f32 live range and an
        # unmasked lane-dense store when H % 128 == 0.
        y1 = (x_ref[rows, :H] + f_cur).astype(out_ref.dtype)
        out_ref[rows, :H] = y1

        if j + 1 < n_sub:
            f_next = f_of(j + 1)          # overlaps with G(chunk j) below

        # y2 = x2 + G(y1); uses the activation-dtype y1, as in the PyTorch module.
        g = jnp.dot(y1, wg, preferred_element_type=jnp.float32) + bg
        out_ref[rows, H:] = (x_ref[rows, H:] + g).astype(out_ref.dtype)


def _round_up(n, m):
    return ((n + m - 1) // m) * m


def _choose_row_tile(rows, d2, itemsize, tile_budget_bytes):
    """Row tile TM.

    - rows < 512: a single full-extent block (always a legal block shape; the
      ~0.35us/step overhead dwarfs any pipelining win at this size).
    - otherwise: as large as the activation-tile budget allows (input + output,
      double-buffered), but capped so the grid keeps >= 2 steps (v7x megacore
      sharding + DMA/compute overlap), rounded to a multiple of 256 (full MXU
      M passes on v6e/v7x; also a multiple of 128 for v5e).
    """
    if rows < 512:
        return rows
    bytes_per_row = 4 * d2 * itemsize            # (in + out) x 2 pipeline buffers
    tm = tile_budget_bytes // bytes_per_row
    tm = min(tm, -(-rows // 2), 2048)            # >= 2 grid steps, sane upper cap
    if tm >= 256:
        return (tm // 256) * 256
    return max(128, (tm // 128) * 128)


def reversible_block_forward(x, wf, bf, wg, bg):
    """x: [B, S, 2*H] -> [B, S, 2*H]. Equivalent to the PyTorch forward:
         x1, x2 = chunk(x, 2, dim=-1)
         y1 = x1 + (x2 @ wf + bf)
         y2 = x2 + (y1 @ wg + bg)
         return cat([y1, y2], dim=-1)
    """
    B, S, D2 = x.shape
    assert D2 % 2 == 0, "last dim must be even (chunked into two halves)"
    H = D2 // 2
    assert wf.shape == (H, H) and wg.shape == (H, H)
    rows = B * S

    # Free reshapes (merge leading dims / add a unit dim) -- no HBM copies.
    x_flat = x.reshape(rows, D2)
    bf2 = bf.reshape(1, H)
    bg2 = bg.reshape(1, H)

    x_isz = x.dtype.itemsize
    w_isz = wf.dtype.itemsize

    # --- VMEM accounting (padded to the (8, 128) VMEM tile grid) -------------
    # Weights/biases are grid-invariant but budgeted as double-buffered, which
    # is what Mosaic allocates by default for BlockSpec inputs (conservative).
    w_resident = 2 * 2 * _round_up(H, 8) * _round_up(H, 128) * w_isz
    b_resident = 2 * 2 * 8 * _round_up(H, 128) * bf.dtype.itemsize
    min_tile = 4 * 128 * _round_up(D2, 128) * x_isz
    if w_resident + b_resident + min_tile > _VMEM_BUDGET_BYTES:
        # TODO(synk): for very large H (two resident HxH weights no longer fit
        # v7x's 64 MiB VMEM per TC) stream the weights in K-chunks with
        # pltpu.emit_pipeline instead of keeping them fully resident.
        raise NotImplementedError(
            f"H={H} too large for resident F/G weights under a "
            f"{_VMEM_BUDGET_BYTES >> 20} MiB VMEM budget")

    tm = _choose_row_tile(rows, D2, x_isz,
                          _VMEM_BUDGET_BYTES - w_resident - b_resident)
    grid = (pl.cdiv(rows, tm),)

    tile_bytes = 4 * _round_up(tm, 8) * _round_up(D2, 128) * x_isz
    vmem_used = w_resident + b_resident + tile_bytes
    vmem_limit = int(min(max(vmem_used + (16 << 20), 32 << 20), _VMEM_LIMIT_CAP))

    # NOTE: the in-kernel split (x[:, :H] / x[:, H:]) and half-slab stores are
    # unmasked lane-dense vector ops only when H % 128 == 0; smaller H (like
    # the demo below) is still correct but uses masked partial-lane stores.
    row_spec = pl.BlockSpec((tm, D2), lambda i: (i, 0))      # x and y tiles
    weight_spec = pl.BlockSpec((H, H), lambda i: (0, 0))     # resident weights
    bias_spec = pl.BlockSpec((1, H), lambda i: (0, 0))       # resident biases

    cost = pl.CostEstimate(
        flops=4 * rows * H * H,                              # two (rows,H)x(H,H) matmuls
        transcendentals=0,
        bytes_accessed=2 * rows * D2 * x_isz                 # x read + y written
        + 2 * H * H * w_isz
        + 2 * H * bf.dtype.itemsize,
    )

    out_flat = pl.pallas_call(
        rev_block_kernel,
        grid=grid,
        in_specs=[row_spec, weight_spec, bias_spec, weight_spec, bias_spec],
        out_specs=row_spec,
        out_shape=jax.ShapeDtypeStruct((rows, D2), x.dtype),
        compiler_params=pltpu.CompilerParams(
            dimension_semantics=("parallel",),               # shard rows across v7x's 2 TCs
            vmem_limit_bytes=vmem_limit,
        ),
        cost_estimate=cost,
    )(x_flat, wf, bf2, wg, bg2)

    return out_flat.reshape(B, S, D2)


if __name__ == "__main__":
    # TODO(synk): only the forward pass is implemented; ReversibleBlock.backward
    # (activation reconstruction) is training-time machinery, not a forward op.
    B, S, H = 2, 8, 32  # x has last dim 2*H = 64

    key = jax.random.PRNGKey(0)
    kx, kwf, kbf, kwg, kbg = jax.random.split(key, 5)

    x = jax.random.normal(kx, (B, S, 2 * H), dtype=jnp.float32)
    # Deterministic synthetic parameters for F and G (Linear(H, H) each).
    wf = jax.random.normal(kwf, (H, H), dtype=jnp.float32) * 0.1
    bf = jax.random.normal(kbf, (H,), dtype=jnp.float32) * 0.1
    wg = jax.random.normal(kwg, (H, H), dtype=jnp.float32) * 0.1
    bg = jax.random.normal(kbg, (H,), dtype=jnp.float32) * 0.1

    out = jax.jit(reversible_block_forward)(x, wf, bf, wg, bg)
    out = jax.block_until_ready(out)

    # Pure-JAX reference for correctness.
    x1, x2 = x[..., :H], x[..., H:]
    y1_ref = x1 + (x2 @ wf + bf)
    y2_ref = x2 + (y1_ref @ wg + bg)
    ref = jnp.concatenate([y1_ref, y2_ref], axis=-1)

    assert out.shape == x.shape and out.dtype == x.dtype
    assert jnp.allclose(out, ref, atol=1e-5, rtol=1e-5)
    print("KERNEL_OK")
</pallas_src>

<mosaic_0001>
module attributes {stable_mosaic.version = 11 : i64} {
  func.func @rev_block_kernel(%arg0: i32, %arg1: memref<16x64xf32, #tpu.memory_space<vmem>>, %arg2: memref<32x32xf32, #tpu.memory_space<vmem>>, %arg3: memref<1x32xf32, #tpu.memory_space<vmem>>, %arg4: memref<32x32xf32, #tpu.memory_space<vmem>>, %arg5: memref<1x32xf32, #tpu.memory_space<vmem>>, %arg6: memref<16x64xf32, #tpu.memory_space<vmem>>) attributes {dimension_semantics = [#tpu.dimension_semantics<parallel>], iteration_bounds = array<i64: 1>, scalar_prefetch = 0 : i64, scratch_operands = 0 : i64, tpu.core_type = #tpu.core_type<tc>, window_params = [{transform_indices = @transform_0, window_bounds = array<i64: 16, 64>}, {pipeline_mode = #tpu.pipeline_mode<synchronous>, transform_indices = @transform_1, window_bounds = array<i64: 32, 32>}, {pipeline_mode = #tpu.pipeline_mode<synchronous>, transform_indices = @transform_2, window_bounds = array<i64: 1, 32>}, {pipeline_mode = #tpu.pipeline_mode<synchronous>, transform_indices = @transform_3, window_bounds = array<i64: 32, 32>}, {pipeline_mode = #tpu.pipeline_mode<synchronous>, transform_indices = @transform_4, window_bounds = array<i64: 1, 32>}, {transform_indices = @transform_5, window_bounds = array<i64: 16, 64>}]} {
    %c0 = arith.constant 0 : index
    %c0_0 = arith.constant 0 : index
    %0 = vector.load %arg2[%c0, %c0_0] : memref<32x32xf32, #tpu.memory_space<vmem>>, vector<32x32xf32>
    %c0_1 = arith.constant 0 : index
    %c0_2 = arith.constant 0 : index
    %1 = vector.load %arg4[%c0_1, %c0_2] : memref<32x32xf32, #tpu.memory_space<vmem>>, vector<32x32xf32>
    %c0_3 = arith.constant 0 : index
    %c0_4 = arith.constant 0 : index
    %2 = vector.load %arg3[%c0_3, %c0_4] : memref<1x32xf32, #tpu.memory_space<vmem>>, vector<1x32xf32>
    %c0_5 = arith.constant 0 : index
    %c0_6 = arith.constant 0 : index
    %3 = vector.load %arg5[%c0_5, %c0_6] : memref<1x32xf32, #tpu.memory_space<vmem>>, vector<1x32xf32>
    %c0_7 = arith.constant 0 : index
    %c32 = arith.constant 32 : index
    %4 = vector.load %arg1[%c0_7, %c32] : memref<16x64xf32, #tpu.memory_space<vmem>>, vector<16x32xf32>
    %cst = arith.constant dense<0.000000e+00> : vector<16x32xf32>
    %5 = tpu.matmul %4, %0, %cst {dimension_numbers = #tpu.dot_dimension_numbers<[1], [0], [0], [1], [0, 0, 1, 1], [], []>} : vector<16x32xf32>, vector<32x32xf32>, vector<16x32xf32> -> vector<16x32xf32>
    %6 = vector.broadcast %2 : vector<1x32xf32> to vector<16x32xf32>
    %7 = arith.addf %5, %6 : vector<16x32xf32>
    %c0_8 = arith.constant 0 : index
    %c0_9 = arith.constant 0 : index
    %8 = vector.load %arg1[%c0_8, %c0_9] : memref<16x64xf32, #tpu.memory_space<vmem>>, vector<16x32xf32>
    %9 = arith.addf %8, %7 : vector<16x32xf32>
    %c0_10 = arith.constant 0 : index
    %c0_11 = arith.constant 0 : index
    %10 = vector.load %arg6[%c0_10, %c0_11] : memref<16x64xf32, #tpu.memory_space<vmem>>, vector<16x32xf32>
    tpu.vector_store %arg6[%c0_10, %c0_11], %9 {strides = array<i32>} : memref<16x64xf32, #tpu.memory_space<vmem>>, vector<16x32xf32>,
    %cst_12 = arith.constant dense<0.000000e+00> : vector<16x32xf32>
    %11 = tpu.matmul %9, %1, %cst_12 {dimension_numbers = #tpu.dot_dimension_numbers<[1], [0], [0], [1], [0, 0, 1, 1], [], []>} : vector<16x32xf32>, vector<32x32xf32>, vector<16x32xf32> -> vector<16x32xf32>
    %12 = vector.broadcast %3 : vector<1x32xf32> to vector<16x32xf32>
    %13 = arith.addf %11, %12 : vector<16x32xf32>
    %c0_13 = arith.constant 0 : index
    %c32_14 = arith.constant 32 : index
    %14 = vector.load %arg1[%c0_13, %c32_14] : memref<16x64xf32, #tpu.memory_space<vmem>>, vector<16x32xf32>
    %15 = arith.addf %14, %13 : vector<16x32xf32>
    %c0_15 = arith.constant 0 : index
    %c32_16 = arith.constant 32 : index
    %16 = vector.load %arg6[%c0_15, %c32_16] : memref<16x64xf32, #tpu.memory_space<vmem>>, vector<16x32xf32>
    tpu.vector_store %arg6[%c0_15, %c32_16], %15 {strides = array<i32>} : memref<16x64xf32, #tpu.memory_space<vmem>>, vector<16x32xf32>,
    return
  }
  func.func @transform_0(%arg0: i32) -> (i32, i32) {
    %c0_i32 = arith.constant 0 : i32
    %c0_i32_0 = arith.constant 0 : i32
    return %arg0, %c0_i32 : i32, i32
  }
  func.func @transform_1(%arg0: i32) -> (i32, i32) {
    %c0_i32 = arith.constant 0 : i32
    %c0_i32_0 = arith.constant 0 : i32
    %c0_i32_1 = arith.constant 0 : i32
    return %c0_i32, %c0_i32_0 : i32, i32
  }
  func.func @transform_2(%arg0: i32) -> (i32, i32) {
    %c0_i32 = arith.constant 0 : i32
    %c0_i32_0 = arith.constant 0 : i32
    %c0_i32_1 = arith.constant 0 : i32
    return %c0_i32, %c0_i32_0 : i32, i32
  }
  func.func @transform_3(%arg0: i32) -> (i32, i32) {
    %c0_i32 = arith.constant 0 : i32
    %c0_i32_0 = arith.constant 0 : i32
    %c0_i32_1 = arith.constant 0 : i32
    return %c0_i32, %c0_i32_0 : i32, i32
  }
  func.func @transform_4(%arg0: i32) -> (i32, i32) {
    %c0_i32 = arith.constant 0 : i32
    %c0_i32_0 = arith.constant 0 : i32
    %c0_i32_1 = arith.constant 0 : i32
    return %c0_i32, %c0_i32_0 : i32, i32
  }
  func.func @transform_5(%arg0: i32) -> (i32, i32) {
    %c0_i32 = arith.constant 0 : i32
    %c0_i32_0 = arith.constant 0 : i32
    return %arg0, %c0_i32 : i32, i32
  }
}

</mosaic_0001>

<llo_original>
// kernel: reversible_block_forward.1
$region0: #{reversible_block_forward.1}
  #allocation0 [shape = 'u32[]', space=smem, size = 0x4, offset = 0x4, fixed_abs, tag = 'smem constant byte address 0x4 - core index']
  #allocation1 [shape = 'u32[144,128]{1,0:T(1,128)}', space=vmem, size = 0x12000, scoped, tag = 'internal scratch']
  %s0 = inlined_call_operand.hbm [shape: f32[16,64], index: 0, kind: input, shape index: {}]
  %s1 = inlined_call_operand.hbm [shape: f32[32,32], index: 1, kind: input, shape index: {}]
  %s2 = inlined_call_operand.vmem [shape: f32[1,32], index: 2, kind: input, shape index: {}]
  %s3 = inlined_call_operand.hbm [shape: f32[32,32], index: 3, kind: input, shape index: {}]
  %s4 = inlined_call_operand.vmem [shape: f32[1,32], index: 4, kind: input, shape index: {}]
  %s5 = inlined_call_operand.hbm [shape: f32[16,64], index: 5, kind: output, shape index: {}]
  %s6 = sld [smem:[#allocation0]]
  $region42: #{reversible_block_forward.1} parent=0
    _
  %s8 = ssub.s32 1, %s6
  %s9 = scalar_select 0, %s8, %s6
  $region1: #{reversible_block_forward.1} parent=0
    #allocation2 [shape = 'u8[8192]{0}', space=vmem, size = 0x2000, scoped, tag = 'input window, operand 0, single buffered']
    #allocation3 [shape = 's32[1]{0}', space=sflag, size = 0x4, scoped, tag = 'scoped memory for reversible_block_forward.1']
    #allocation4 [shape = 's32[1]{0}', space=sflag, size = 0x4, scoped, tag = 'scoped memory for reversible_block_forward.1']
    #allocation5 [shape = 'u8[16384]{0}', space=vmem, size = 0x4000, scoped, tag = 'input window, operand 1, single buffered']
    #allocation6 [shape = 's32[1]{0}', space=sflag, size = 0x4, scoped, tag = 'scoped memory for reversible_block_forward.1']
    #allocation7 [shape = 'u8[16384]{0}', space=vmem, size = 0x4000, scoped, tag = 'input window, operand 3, single buffered']
    #allocation8 [shape = 'u8[8192]{0}', space=vmem, size = 0x2000, scoped, tag = 'output window, operand 0, single buffered']
    %10 = vsyncpa [#allocation3], 0
    %11 = vsyncpa [#allocation6], 0
    %12 = vsyncpa [#allocation4], 0
    // Predicated region
    $region2: #{reversible_block_forward.1} parent=1 // pred_check
      _
    $region3: #{reversible_block_forward.1} parent=1 // pred_check_branch
      %14 = sbr.rel (0) target = $region5
    $region4: #{reversible_block_forward.1} parent=1 // pred_region
      %s16 = ssub.s32 256, 256
      %17 = vsyncadd [#allocation3], %s16
      %s18 = sshll.u32 [#allocation2], 4
      %s19 = int_to_ptr.vmem [resolvable:$true] %s18
      %24 = dma.hbm_to_vmem [thread:$0]  %s0, 256, %s19, [#allocation3], 128, 128, 8
    $region5: #{reversible_block_forward.1} parent=1 // pred_fallthru
      _
    // Predicated region
    $region6: #{reversible_block_forward.1} parent=1 // pred_check
      _
    $region7: #{reversible_block_forward.1} parent=1 // pred_check_branch
      %26 = sbr.rel (0) target = $region9
    $region8: #{reversible_block_forward.1} parent=1 // pred_region
      %s28 = ssub.s32 512, 512
      %29 = vsyncadd [#allocation6], %s28
      %s30 = sshll.u32 [#allocation5], 4
      %s31 = int_to_ptr.vmem [resolvable:$true] %s30
      %36 = dma.hbm_to_vmem [thread:$0]  %s1, 512, %s31, [#allocation6], 128, 128, 8
    $region9: #{reversible_block_forward.1} parent=1 // pred_fallthru
      _
    // Predicated region
    $region10: #{reversible_block_forward.1} parent=1 // pred_check
      _
    $region11: #{reversible_block_forward.1} parent=1 // pred_check_branch
      %38 = sbr.rel (0) target = $region13
    $region12: #{reversible_block_forward.1} parent=1 // pred_region
      _
    $region13: #{reversible_block_forward.1} parent=1 // pred_fallthru
      _
    // Predicated region
    $region14: #{reversible_block_forward.1} parent=1 // pred_check
      _
    $region15: #{reversible_block_forward.1} parent=1 // pred_check_branch
      %40 = sbr.rel (0) target = $region17
    $region16: #{reversible_block_forward.1} parent=1 // pred_region
      %s42 = ssub.s32 512, 512
      %43 = vsyncadd [#allocation6], %s42
      %s44 = sshll.u32 [#allocation7], 4
      %s45 = int_to_ptr.vmem [resolvable:$true] %s44
      %50 = dma.hbm_to_vmem [thread:$0]  %s3, 512, %s45, [#allocation6], 128, 128, 8
    $region17: #{reversible_block_forward.1} parent=1 // pred_fallthru
      _
    // Predicated region
    $region18: #{reversible_block_forward.1} parent=1 // pred_check
      _
    $region19: #{reversible_block_forward.1} parent=1 // pred_check_branch
      %52 = sbr.rel (0) target = $region21
    $region20: #{reversible_block_forward.1} parent=1 // pred_region
      _
    $region21: #{reversible_block_forward.1} parent=1 // pred_fallthru
      _
    // Predicated region
    $region22: #{reversible_block_forward.1} parent=1 // pred_check
      _
    $region23: #{reversible_block_forward.1} parent=1 // pred_check_branch
      %54 = sbr.rel (0) target = $region25
    $region24: #{reversible_block_forward.1} parent=1 // pred_region
      %55 = dma.done [#allocation3], 256
    $region25: #{reversible_block_forward.1} parent=1 // pred_fallthru
      _
    // Predicated region
    $region26: #{reversible_block_forward.1} parent=1 // pred_check
      _
    $region27: #{reversible_block_forward.1} parent=1 // pred_check_branch
      %57 = sbr.rel (0) target = $region29
    $region28: #{reversible_block_forward.1} parent=1 // pred_region
      %58 = dma.done [#allocation6], 512
    $region29: #{reversible_block_forward.1} parent=1 // pred_fallthru
      _
    // Predicated region
    $region30: #{reversible_block_forward.1} parent=1 // pred_check
      _
    $region31: #{reversible_block_forward.1} parent=1 // pred_check_branch
      %60 = sbr.rel (0) target = $region33
    $region32: #{reversible_block_forward.1} parent=1 // pred_region
      %61 = dma.done [#allocation6], 512
    $region33: #{reversible_block_forward.1} parent=1 // pred_fallthru
      _
    %v62 = vld [vmem:[#allocation5] sm:$0xff]
    %v63 = vld [vmem:[#allocation5 + $0x8] sm:$0xff]
    %v64 = vld [vmem:[#allocation5 + $0x10] sm:$0xff]
    %v65 = vld [vmem:[#allocation5 + $0x18] sm:$0xff]
    %v66 = vld [vmem:[#allocation7] sm:$0xff]
    %v67 = vld [vmem:[#allocation7 + $0x8] sm:$0xff]
    %v68 = vld [vmem:[#allocation7 + $0x10] sm:$0xff]
    %v69 = vld [vmem:[#allocation7 + $0x18] sm:$0xff]
    %v70 = vld [vmem:[%s2] sm:$0x1]
    %v71 = vld [vmem:[%s4] sm:$0x1]
    %v72 = vld [vmem:[#allocation2] sm:$0xff]
    %v73 = vld [vmem:[#allocation2 + $0x8] sm:$0xff]
    %v75 = vlaneseq
    %v76 = vshrl.u32 %v75, 7
    %v77 = vsub.s32 0, %v76
    %v78 = vrot.slane %v70, %v77
    %82 = vrot.lane.b32.xlu0 %v72, 96
    %v83 = vpop.permute.xlu0 %82
    %84 = vrot.lane.b32.xlu0 %v73, 96
    %v85 = vpop.permute.xlu0 %84
    %vm86 = vcmask 261120
    %v87 = vsel %vm86, %v83, 0
    %v89 = vsel %vm86, %v85, 0
    %91 = vmatprep.subr.mxu0 0.0
    %92 = vmatpush1.msra.mxu0 0.0
    %93 = vmatprep.subr.mxu0 0.0
    %94 = vmatpush1.msra.mxu0 0.0
    %95 = vmatprep.subr.mxu0 0.0
    %96 = vmatpush1.msra.mxu0 0.0
    %97 = vmatprep.subr.mxu0 0.0
    %98 = vmatpush1.msra.mxu0 0.0
    %99 = vmatprep.subr.mxu0 0.0
    %100 = vmatpush1.msra.mxu0 0.0
    %101 = vmatprep.subr.mxu0 0.0
    %102 = vmatpush1.msra.mxu0 0.0
    %103 = vmatprep.subr.mxu0 0.0
    %104 = vmatpush1.msra.mxu0 0.0
    %105 = vmatprep.subr.mxu0 0.0
    %106 = vmatpush1.msra.mxu0 0.0
    %107 = vmatprep.subr.mxu0 0.0
    %108 = vmatpush1.msra.mxu0 0.0
    %109 = vmatprep.subr.mxu0 0.0
    %110 = vmatpush1.msra.mxu0 0.0
    %111 = vmatprep.subr.mxu0 0.0
    %112 = vmatpush1.msra.mxu0 0.0
    %113 = vmatprep.subr.mxu0 0.0
    %114 = vmatpush1.msra.mxu0 0.0
    %115 = vmatprep.subr.mxu0 0.0
    %116 = vmatpush1.msra.mxu0 %v65
    %117 = vmatprep.subr.mxu0 0.0
    %118 = vmatpush1.msra.mxu0 %v64
    %119 = vmatprep.subr.mxu0 0.0
    %120 = vmatpush1.msra.mxu0 %v63
    %121 = vmatprep.subr.mxu0 0.0
    %122 = vmatpush1.msra.mxu0 %v62
    %123 = vmatprep.subr.mxu0 0.0
    %124 = vmatpush2.msra.mxu0 0.0
    %125 = vmatprep.subr.mxu0 0.0
    %126 = vmatpush2.msra.mxu0 0.0
    %127 = vmatprep.subr.mxu0 0.0
    %128 = vmatpush2.msra.mxu0 0.0
    %129 = vmatprep.subr.mxu0 0.0
    %130 = vmatpush2.msra.mxu0 0.0
    %131 = vmatprep.subr.mxu0 0.0
    %132 = vmatpush2.msra.mxu0 0.0
    %133 = vmatprep.subr.mxu0 0.0
    %134 = vmatpush2.msra.mxu0 0.0
    %135 = vmatprep.subr.mxu0 0.0
    %136 = vmatpush2.msra.mxu0 0.0
    %137 = vmatprep.subr.mxu0 0.0
    %138 = vmatpush2.msra.mxu0 0.0
    %139 = vmatprep.subr.mxu0 0.0
    %140 = vmatpush2.msra.mxu0 0.0
    %141 = vmatprep.subr.mxu0 0.0
    %142 = vmatpush2.msra.mxu0 0.0
    %143 = vmatprep.subr.mxu0 0.0
    %144 = vmatpush2.msra.mxu0 0.0
    %145 = vmatprep.subr.mxu0 0.0
    %146 = vmatpush2.msra.mxu0 0.0
    %147 = vmatprep.subr.mxu0 0.0
    %148 = vmatpush2.msra.mxu0 0.0
    %149 = vmatprep.subr.mxu0 0.0
    %150 = vmatpush2.msra.mxu0 0.0
    %151 = vmatprep.subr.mxu0 0.0
    %152 = vmatpush2.msra.mxu0 0.0
    %153 = vmatprep.subr.mxu0 0.0
    %154 = vmatpush2.msra.mxu0 0.0
    %155 = vmatprep.mubr.f32.mxu0 0.0
    %156 = vmatmul.mubr.f32.gmra.mxu0 %v87
    %v157 = vpop.f32.mrf.mxu0
    %v158 = vadd.f32 %v78, %v157
    %v159 = vpop.f32.mrf.mxu0
    %160 = vmatprep.mubr.f32.mxu0 0.0
    %161 = vmatmul.mubr.f32.gmra.mxu0 %v89
    %v162 = vpop.f32.mrf.mxu0
    %v163 = vadd.f32 %v78, %v162
    %v164 = vpop.f32.mrf.mxu0
    %165 = vdwg.mxu0
    %v166 = vadd.f32 %v72, %v158
    %v167 = vadd.f32 %v73, %v163
    %168 = vst.msk [vmem:[#allocation8] sm:$0xff] %vm86, %v166
    %169 = vst.msk [vmem:[#allocation8 + $0x8] sm:$0xff] %vm86, %v167
    %v171 = vlaneseq
    %v172 = vshrl.u32 %v171, 7
    %v173 = vsub.s32 0, %v172
    %v174 = vrot.slane %v71, %v173
    %v177 = vsel %vm86, %v166, 0
    %v180 = vsel %vm86, %v167, 0
    %182 = vmatprep.subr.mxu0 0.0
    %183 = vmatpush1.msra.mxu0 0.0
    %184 = vmatprep.subr.mxu0 0.0
    %185 = vmatpush1.msra.mxu0 0.0
    %186 = vmatprep.subr.mxu0 0.0
    %187 = vmatpush1.msra.mxu0 0.0
    %188 = vmatprep.subr.mxu0 0.0
    %189 = vmatpush1.msra.mxu0 0.0
    %190 = vmatprep.subr.mxu0 0.0
    %191 = vmatpush1.msra.mxu0 0.0
    %192 = vmatprep.subr.mxu0 0.0
    %193 = vmatpush1.msra.mxu0 0.0
    %194 = vmatprep.subr.mxu0 0.0
    %195 = vmatpush1.msra.mxu0 0.0
    %196 = vmatprep.subr.mxu0 0.0
    %197 = vmatpush1.msra.mxu0 0.0
    %198 = vmatprep.subr.mxu0 0.0
    %199 = vmatpush1.msra.mxu0 0.0
    %200 = vmatprep.subr.mxu0 0.0
    %201 = vmatpush1.msra.mxu0 0.0
    %202 = vmatprep.subr.mxu0 0.0
    %203 = vmatpush1.msra.mxu0 0.0
    %204 = vmatprep.subr.mxu0 0.0
    %205 = vmatpush1.msra.mxu0 0.0
    %206 = vmatprep.subr.mxu0 0.0
    %207 = vmatpush1.msra.mxu0 %v69
    %208 = vmatprep.subr.mxu0 0.0
    %209 = vmatpush1.msra.mxu0 %v68
    %210 = vmatprep.subr.mxu0 0.0
    %211 = vmatpush1.msra.mxu0 %v67
    %212 = vmatprep.subr.mxu0 0.0
    %213 = vmatpush1.msra.mxu0 %v66
    %214 = vmatprep.subr.mxu0 0.0
    %215 = vmatpush2.msra.mxu0 0.0
    %216 = vmatprep.subr.mxu0 0.0
    %217 = vmatpush2.msra.mxu0 0.0
    %218 = vmatprep.subr.mxu0 0.0
    %219 = vmatpush2.msra.mxu0 0.0
    %220 = vmatprep.subr.mxu0 0.0
    %221 = vmatpush2.msra.mxu0 0.0
    %222 = vmatprep.subr.mxu0 0.0
    %223 = vmatpush2.msra.mxu0 0.0
    %224 = vmatprep.subr.mxu0 0.0
    %225 = vmatpush2.msra.mxu0 0.0
    %226 = vmatprep.subr.mxu0 0.0
    %227 = vmatpush2.msra.mxu0 0.0
    %228 = vmatprep.subr.mxu0 0.0
    %229 = vmatpush2.msra.mxu0 0.0
    %230 = vmatprep.subr.mxu0 0.0
    %231 = vmatpush2.msra.mxu0 0.0
    %232 = vmatprep.subr.mxu0 0.0
    %233 = vmatpush2.msra.mxu0 0.0
    %234 = vmatprep.subr.mxu0 0.0
    %235 = vmatpush2.msra.mxu0 0.0
    %236 = vmatprep.subr.mxu0 0.0
    %237 = vmatpush2.msra.mxu0 0.0
    %238 = vmatprep.subr.mxu0 0.0
    %239 = vmatpush2.msra.mxu0 0.0
    %240 = vmatprep.subr.mxu0 0.0
    %241 = vmatpush2.msra.mxu0 0.0
    %242 = vmatprep.subr.mxu0 0.0
    %243 = vmatpush2.msra.mxu0 0.0
    %244 = vmatprep.subr.mxu0 0.0
    %245 = vmatpush2.msra.mxu0 0.0
    %246 = vmatprep.mubr.f32.mxu0 0.0
    %247 = vmatmul.mubr.f32.gmra.mxu0 %v177
    %v248 = vpop.f32.mrf.mxu0
    %v249 = vadd.f32 %v174, %v248
    %v250 = vpop.f32.mrf.mxu0
    %251 = vmatprep.mubr.f32.mxu0 0.0
    %252 = vmatmul.mubr.f32.gmra.mxu0 %v180
    %v253 = vpop.f32.mrf.mxu0
    %v254 = vadd.f32 %v174, %v253
    %v255 = vpop.f32.mrf.mxu0
    %256 = vdwg.mxu0
    %v257 = vld [vmem:[#allocation2] sm:$0xff]
    %v258 = vld [vmem:[#allocation2 + $0x8] sm:$0xff]
    %261 = vrot.lane.b32.xlu0 %v249, 32
    %v262 = vpop.permute.xlu0 %261
    %263 = vrot.lane.b32.xlu0 %v254, 32
    %v264 = vpop.permute.xlu0 %263
    %v267 = vadd.f32 %v257, %v262
    %v268 = vadd.f32 %v258, %v264
    %vm269 = vcmask 523520
    %270 = vst.msk [vmem:[#allocation8] sm:$0xff] %vm269, %v267
    %271 = vst.msk [vmem:[#allocation8 + $0x8] sm:$0xff] %vm269, %v268
    // Predicated region
    $region34: #{reversible_block_forward.1} parent=1 // pred_check
      _
    $region35: #{reversible_block_forward.1} parent=1 // pred_check_branch
      %273 = sbr.rel (0) target = $region37
    $region36: #{reversible_block_forward.1} parent=1 // pred_region
      %s275 = ssub.s32 256, 256
      %276 = vsyncadd [#allocation4], %s275
      %s277 = sshll.u32 [#allocation8], 4
      %s278 = int_to_ptr.vmem [resolvable:$true] %s277
      %283 = dma.vmem_to_hbm [thread:$0]  %s278, 256, %s5, [#allocation4], 128, 128, 8
    $region37: #{reversible_block_forward.1} parent=1 // pred_fallthru
      _
    // Predicated region
    $region38: #{reversible_block_forward.1} parent=1 // pred_check
      _
    $region39: #{reversible_block_forward.1} parent=1 // pred_check_branch
      %285 = sbr.rel (0) target = $region41
    $region40: #{reversible_block_forward.1} parent=1 // pred_region
      %286 = dma.done [#allocation4], 256
    $region41: #{reversible_block_forward.1} parent=1 // pred_fallthru
      _
    %287 = vsyncpa [#allocation3], 1
    %288 = vsyncpa [#allocation6], 1
    %289 = vsyncpa [#allocation4], 1

</llo_original>
